<compile_context>
chip_gen: v5e
topology: v5e:2x2
jax: 0.10.0
libtpu: 0.0.40
codegen_flags: <defaults>
</compile_context>

<pallas_src>
import jax
import jax.numpy as jnp
from jax.experimental import pallas as pl
from jax.experimental.pallas import tpu as pltpu


def _contract_kernel(x_ref, sel_ref, o_ref):
    # x_ref:   (Rblk, s*W)     rows are (c, ho) pairs; lane q = sh*W + w holds
    #                          x[n, c, s*ho + sh, w].
    # sel_ref: (wc, wc)        0/1 de-interleave matrix for one lane chunk:
    #                          column (sw*(wc//s) + j) selects chunk lane (s*j + sw).
    # o_ref:   (s, s, Rblk, Wo) output phases (sh, sw).
    s = o_ref.shape[0]
    wo = o_ref.shape[3]
    w = s * wo
    wc = sel_ref.shape[0]
    wo_c = wc // s
    sel = sel_ref[...]
    for sh in range(s):                       # static unroll (s is tiny)
        for g in range(w // wc):              # static unroll over lane chunks
            base = sh * w + g * wc
            chunk = x_ref[:, base:base + wc]
            # Exact 0/1 selection matmul (one block-diagonal piece).  With
            # HIGHEST precision the f32->bf16x passes reconstruct the operand
            # exactly, so the permutation is value-exact.
            d = jnp.dot(chunk, sel,
                        precision=jax.lax.Precision.HIGHEST,
                        preferred_element_type=jnp.float32)
            d = d.astype(o_ref.dtype)
            for sw in range(s):
                o_ref[sh, sw, :, g * wo_c:(g + 1) * wo_c] = \
                    d[:, sw * wo_c:(sw + 1) * wo_c]


def _pick_wchunk(w, s):
    """Lane-chunk width for the block-diagonal de-interleave matmul.

    Must divide w and be a multiple of s.  Small w -> dense (cheap anyway);
    otherwise the smallest divisor >= 128*s caps MXU work per element
    independently of w; if no such divisor exists, fall back to dense."""
    if w <= 512:
        return w
    for d in range(128 * s, w, s):
        if w % d == 0:
            return d
    return w


def _pick_rblk(rows, row_bytes, n_batch, target_bytes, min_steps=4):
    """Rows (of the merged C*Ho axis) per block: largest multiple of 8 within the
    byte budget, clamped to the array; then shrunk (if possible) so the grid has
    enough steps for megacore load balance."""
    budget_rows = max(8, int(target_bytes) // max(1, row_bytes))
    if rows <= budget_rows:
        rblk = rows                      # full dim is always a legal block shape
    else:
        rblk = max(8, (budget_rows // 8) * 8)
    while n_batch * (-(-rows // rblk)) < min_steps and rblk > 8:
        rblk = max(8, ((rblk // 2) // 8) * 8)
    return rblk


def contract_forward(x, gain=2):
    """x: [N, C, H, W] (NCHW, float dtype). Returns [N, C*gain^2, H//gain, W//gain]."""
    s = int(gain)
    if s == 1:
        return x
    N, C, H, W = x.shape
    assert H % s == 0 and W % s == 0, "Contract requires H and W divisible by gain"
    assert jnp.issubdtype(x.dtype, jnp.floating), "Contract kernel expects a float dtype"
    Ho, Wo = H // s, W // s
    rows = C * Ho
    itemsize = jnp.dtype(x.dtype).itemsize

    # --- metadata-only input reshape: rows = (c, ho), lanes = (sh, w) ---
    x3 = x.reshape(N, rows, s * W)

    # --- 0/1 chunk de-interleave matrix: col (sw*(wc//s) + j) <- lane (s*j + sw) ---
    wc = _pick_wchunk(W, s)
    p = jnp.arange(wc)
    cols = (p % s) * (wc // s) + (p // s)
    sel = jnp.zeros((wc, wc), x.dtype).at[p, cols].set(1)

    # --- VMEM budget: 4 block copies (in/out, double-buffered) + temps + sel ---
    sel_bytes = wc * wc * itemsize
    block_target = max(256 << 10, min(4 << 20, ((24 << 20) - 2 * sel_bytes) // 5))
    row_bytes = s * W * itemsize
    rblk = _pick_rblk(rows, row_bytes, N, block_target)
    vmem_limit = int(max(32 << 20, 2 * sel_bytes + 5 * block_target + (4 << 20)))

    grid = (N, pl.cdiv(rows, rblk))

    cost = pl.CostEstimate(
        flops=2 * wc * x.size,                      # tiny selection matmuls
        transcendentals=0,
        bytes_accessed=2 * x.size * itemsize + sel_bytes)

    out5 = pl.pallas_call(
        _contract_kernel,
        out_shape=jax.ShapeDtypeStruct((N, s, s, rows, Wo), x.dtype),
        grid=grid,
        in_specs=[
            # contiguous, lane-dense (rblk, s*W) slab of the merged (C*Ho) axis
            pl.BlockSpec((None, rblk, s * W), lambda n, r: (n, r, 0)),
            # constant-index selection matrix (stays resident in VMEM)
            pl.BlockSpec((wc, wc), lambda n, r: (0, 0)),
        ],
        # one rectangular (s, s, rblk, Wo) block of the phase-major output
        out_specs=pl.BlockSpec((None, s, s, rblk, Wo),
                               lambda n, r: (n, 0, 0, r, 0)),
        compiler_params=pltpu.CompilerParams(
            dimension_semantics=("parallel", "parallel"),
            vmem_limit_bytes=vmem_limit),
        cost_estimate=cost,
    )(x3, sel)

    # --- metadata-only output reshape: channel = sh*s*C + sw*C + c ---
    return out5.reshape(N, s * s * C, Ho, Wo)


def _contract_ref(x, gain):
    # Pure-JAX reference mirroring torch: view -> permute(0,3,5,1,2,4) -> view.
    N, C, H, W = x.shape
    s = gain
    y = x.reshape(N, C, H // s, s, W // s, s)
    y = jnp.transpose(y, (0, 3, 5, 1, 2, 4))
    return y.reshape(N, C * s * s, H // s, W // s)


if __name__ == "__main__":
    key = jax.random.PRNGKey(0)
    k1, k2 = jax.random.split(key)

    # Case 1: canonical small shape.
    x1 = jax.random.normal(k1, (2, 4, 16, 16), dtype=jnp.float32)
    out1 = contract_forward(x1, gain=2)
    jax.block_until_ready(out1)
    ref1 = _contract_ref(x1, 2)
    assert out1.shape == ref1.shape
    assert jnp.allclose(out1, ref1, atol=1e-6, rtol=1e-6)

    # Case 2: odd channel count / rows not divisible by the row tile
    # (exercises the ragged, masked last grid block).
    x2 = jax.random.normal(k2, (1, 3, 20, 20), dtype=jnp.float32)
    out2 = contract_forward(x2, gain=2)
    jax.block_until_ready(out2)
    ref2 = _contract_ref(x2, 2)
    assert out2.shape == ref2.shape
    assert jnp.allclose(out2, ref2, atol=1e-6, rtol=1e-6)

    print("KERNEL_OK")
</pallas_src>

<mosaic_0001>
module attributes {stable_mosaic.version = 11 : i64} {
  func.func @_contract_kernel(%arg0: i32, %arg1: i32, %arg2: memref<1x16x32xf32, #tpu.memory_space<vmem>>, %arg3: memref<16x16xf32, #tpu.memory_space<vmem>>, %arg4: memref<1x2x2x16x8xf32, #tpu.memory_space<vmem>>) attributes {dimension_semantics = [#tpu.dimension_semantics<parallel>, #tpu.dimension_semantics<parallel>], iteration_bounds = array<i64: 2, 2>, scalar_prefetch = 0 : i64, scratch_operands = 0 : i64, tpu.core_type = #tpu.core_type<tc>, window_params = [{transform_indices = @transform_0, window_bounds = array<i64: 1, 16, 32>}, {pipeline_mode = #tpu.pipeline_mode<synchronous>, transform_indices = @transform_1, window_bounds = array<i64: 16, 16>}, {transform_indices = @transform_2, window_bounds = array<i64: 1, 2, 2, 16, 8>}]} {
    %c0 = arith.constant 0 : index
    %c0_0 = arith.constant 0 : index
    %0 = vector.load %arg3[%c0, %c0_0] : memref<16x16xf32, #tpu.memory_space<vmem>>, vector<16x16xf32>
    %c0_1 = arith.constant 0 : index
    %c0_2 = arith.constant 0 : index
    %c0_3 = arith.constant 0 : index
    %1 = vector.load %arg2[%c0_1, %c0_2, %c0_3] : memref<1x16x32xf32, #tpu.memory_space<vmem>>, vector<1x16x16xf32>
    %2 = vector.shape_cast %1 : vector<1x16x16xf32> to vector<16x16xf32>
    %cst = arith.constant dense<0.000000e+00> : vector<16x16xf32>
    %3 = tpu.matmul %2, %0, %cst {dimension_numbers = #tpu.dot_dimension_numbers<[1], [0], [0], [1], [0, 0, 1, 1], [], []>, precision = #tpu.contract_precision<fp32>} : vector<16x16xf32>, vector<16x16xf32>, vector<16x16xf32> -> vector<16x16xf32>
    %4 = vector.extract_strided_slice %3 {offsets = [0, 0], sizes = [16, 8], strides = [1, 1]} : vector<16x16xf32> to vector<16x8xf32>
    %c0_4 = arith.constant 0 : index
    %c0_5 = arith.constant 0 : index
    %c0_6 = arith.constant 0 : index
    %c0_7 = arith.constant 0 : index
    %c0_8 = arith.constant 0 : index
    %5 = vector.load %arg4[%c0_4, %c0_5, %c0_6, %c0_7, %c0_8] : memref<1x2x2x16x8xf32, #tpu.memory_space<vmem>>, vector<1x1x1x16x8xf32>
    %6 = vector.shape_cast %5 : vector<1x1x1x16x8xf32> to vector<16x8xf32>
    %7 = vector.shape_cast %4 : vector<16x8xf32> to vector<1x1x1x16x8xf32>
    tpu.vector_store %arg4[%c0_4, %c0_5, %c0_6, %c0_7, %c0_8], %7 {strides = array<i32>} : memref<1x2x2x16x8xf32, #tpu.memory_space<vmem>>, vector<1x1x1x16x8xf32>,
    %8 = vector.extract_strided_slice %3 {offsets = [0, 8], sizes = [16, 8], strides = [1, 1]} : vector<16x16xf32> to vector<16x8xf32>
    %c0_9 = arith.constant 0 : index
    %c0_10 = arith.constant 0 : index
    %c1 = arith.constant 1 : index
    %c0_11 = arith.constant 0 : index
    %c0_12 = arith.constant 0 : index
    %9 = vector.load %arg4[%c0_9, %c0_10, %c1, %c0_11, %c0_12] : memref<1x2x2x16x8xf32, #tpu.memory_space<vmem>>, vector<1x1x1x16x8xf32>
    %10 = vector.shape_cast %9 : vector<1x1x1x16x8xf32> to vector<16x8xf32>
    %11 = vector.shape_cast %8 : vector<16x8xf32> to vector<1x1x1x16x8xf32>
    tpu.vector_store %arg4[%c0_9, %c0_10, %c1, %c0_11, %c0_12], %11 {strides = array<i32>} : memref<1x2x2x16x8xf32, #tpu.memory_space<vmem>>, vector<1x1x1x16x8xf32>,
    %c0_13 = arith.constant 0 : index
    %c0_14 = arith.constant 0 : index
    %c16 = arith.constant 16 : index
    %12 = vector.load %arg2[%c0_13, %c0_14, %c16] : memref<1x16x32xf32, #tpu.memory_space<vmem>>, vector<1x16x16xf32>
    %13 = vector.shape_cast %12 : vector<1x16x16xf32> to vector<16x16xf32>
    %cst_15 = arith.constant dense<0.000000e+00> : vector<16x16xf32>
    %14 = tpu.matmul %13, %0, %cst_15 {dimension_numbers = #tpu.dot_dimension_numbers<[1], [0], [0], [1], [0, 0, 1, 1], [], []>, precision = #tpu.contract_precision<fp32>} : vector<16x16xf32>, vector<16x16xf32>, vector<16x16xf32> -> vector<16x16xf32>
    %15 = vector.extract_strided_slice %14 {offsets = [0, 0], sizes = [16, 8], strides = [1, 1]} : vector<16x16xf32> to vector<16x8xf32>
    %c0_16 = arith.constant 0 : index
    %c1_17 = arith.constant 1 : index
    %c0_18 = arith.constant 0 : index
    %c0_19 = arith.constant 0 : index
    %c0_20 = arith.constant 0 : index
    %16 = vector.load %arg4[%c0_16, %c1_17, %c0_18, %c0_19, %c0_20] : memref<1x2x2x16x8xf32, #tpu.memory_space<vmem>>, vector<1x1x1x16x8xf32>
    %17 = vector.shape_cast %16 : vector<1x1x1x16x8xf32> to vector<16x8xf32>
    %18 = vector.shape_cast %15 : vector<16x8xf32> to vector<1x1x1x16x8xf32>
    tpu.vector_store %arg4[%c0_16, %c1_17, %c0_18, %c0_19, %c0_20], %18 {strides = array<i32>} : memref<1x2x2x16x8xf32, #tpu.memory_space<vmem>>, vector<1x1x1x16x8xf32>,
    %19 = vector.extract_strided_slice %14 {offsets = [0, 8], sizes = [16, 8], strides = [1, 1]} : vector<16x16xf32> to vector<16x8xf32>
    %c0_21 = arith.constant 0 : index
    %c1_22 = arith.constant 1 : index
    %c1_23 = arith.constant 1 : index
    %c0_24 = arith.constant 0 : index
    %c0_25 = arith.constant 0 : index
    %20 = vector.load %arg4[%c0_21, %c1_22, %c1_23, %c0_24, %c0_25] : memref<1x2x2x16x8xf32, #tpu.memory_space<vmem>>, vector<1x1x1x16x8xf32>
    %21 = vector.shape_cast %20 : vector<1x1x1x16x8xf32> to vector<16x8xf32>
    %22 = vector.shape_cast %19 : vector<16x8xf32> to vector<1x1x1x16x8xf32>
    tpu.vector_store %arg4[%c0_21, %c1_22, %c1_23, %c0_24, %c0_25], %22 {strides = array<i32>} : memref<1x2x2x16x8xf32, #tpu.memory_space<vmem>>, vector<1x1x1x16x8xf32>,
    return
  }
  func.func @transform_0(%arg0: i32, %arg1: i32) -> (i32, i32, i32) {
    %c0_i32 = arith.constant 0 : i32
    %c0_i32_0 = arith.constant 0 : i32
    return %arg0, %arg1, %c0_i32 : i32, i32, i32
  }
  func.func @transform_1(%arg0: i32, %arg1: i32) -> (i32, i32) {
    %c0_i32 = arith.constant 0 : i32
    %c0_i32_0 = arith.constant 0 : i32
    %c0_i32_1 = arith.constant 0 : i32
    return %c0_i32, %c0_i32_0 : i32, i32
  }
  func.func @transform_2(%arg0: i32, %arg1: i32) -> (i32, i32, i32, i32, i32) {
    %c0_i32 = arith.constant 0 : i32
    %c0_i32_0 = arith.constant 0 : i32
    %c0_i32_1 = arith.constant 0 : i32
    %c0_i32_2 = arith.constant 0 : i32
    return %arg0, %c0_i32, %c0_i32_0, %arg1, %c0_i32_1 : i32, i32, i32, i32, i32
  }
}

</mosaic_0001>

<llo_original>
// kernel: tpu_custom_call.1
$region0: #{tpu_custom_call.1}
  #allocation0 [shape = 'u32[]', space=smem, size = 0x4, offset = 0x4, fixed_abs, tag = 'smem constant byte address 0x4 - core index']
  #allocation1 [shape = 'u32[72,128]{1,0:T(1,128)}', space=vmem, size = 0x9000, scoped, tag = 'internal scratch']
  %s0 = inlined_call_operand.hbm [shape: f32[2,32,32], index: 0, kind: input, shape index: {}]
  %s1 = inlined_call_operand.hbm [shape: f32[16,16], index: 1, kind: input, shape index: {}]
  %s2 = inlined_call_operand.vmem [shape: f32[2,2,2,32,8], index: 2, kind: output, shape index: {}]
  %s3 = sld [smem:[#allocation0]]
  $region83: #{tpu_custom_call.1} parent=0
    _
  %s5 = ssub.s32 1, %s3
  %s6 = scalar_select 0, %s5, %s3
  $region1: #{tpu_custom_call.1} parent=0
    #allocation2 [shape = 'u8[16384]{0}', space=vmem, size = 0x4000, scoped, tag = 'input window, operand 0']
    #allocation3 [shape = 's32[2]{0}', space=sflag, size = 0x8, scoped, tag = 'scoped memory for tpu_custom_call.1']
    #allocation4 [shape = 'u8[8192]{0}', space=vmem, size = 0x2000, scoped, tag = 'input window, operand 1, single buffered']
    #allocation5 [shape = 's32[1]{0}', space=sflag, size = 0x4, scoped, tag = 'scoped memory for tpu_custom_call.1']
    #allocation6 [shape = 'u8[65536]{0}', space=vmem, size = 0x10000, scoped, tag = 'output window, operand 0']
    %7 = vsyncpa [#allocation3], 0
    %s8 = scalar_lea.sflag [#allocation3], 1
    %9 = vsyncpa %s8, 0
    %10 = vsyncpa [#allocation5], 0
    loop: start=0, step=1, limit=6
    $region2: #{tpu_custom_call.1} parent=1 // loop_pre_header
      _
    $region3: #{tpu_custom_call.1} parent=1 // loop_header
      %s12 = sphi 0, %s16
      %p13 = scmp.ge.s32.totalorder %s12, 6
      %s19 = sphi 0, %s31
      %s20 = sphi 0, %s27
      %s21 = sphi 0, %s19
      %s22 = sphi 0, %s20
      %s23 = sphi 0, %s21
      %s24 = sphi 0, %s22
      %s36 = sphi 0, %s38
      %s39 = sphi 0, %s36
      %s40 = sphi 0, %s39
      %s56 = sphi 0, %s40
      %s60 = sphi 0, %s60
      %s62 = sphi 0, %s60
      %s63 = sphi 0, %s62
      %s77 = sphi 0, %s63
      %s85 = sphi 0, %s87
      %s88 = sphi 0, %s85
      %s89 = sphi 0, %s88
      %s105 = sphi 0, %s89
    $region4: #{tpu_custom_call.1} parent=1 // loop_header_branch
      %15 = sbr.rel (%p13) target = $region8
    $region5: #{tpu_custom_call.1} parent=1 // loop_body
      %s17 = ssub.s32 %s12, 1
      %s18 = ssub.s32 %s12, 2
      %s25 = sadd.s32 1, %s20
      %p26 = scmp.ge.s32.totalorder %s25, 2
      %s27 = scalar_select %p26, 0, %s25
      %s28 = sadd.s32 1, %s19
      %s29 = scalar_select %p26, %s28, %s19
      %p30 = scmp.ge.s32.totalorder %s29, 2
      %s31 = scalar_select %p30, 0, %s29
      %s32 = ssub.s32 %s19, %s31
      %s33 = ssub.s32 %s20, %s27
      %s34 = sor.u32 %s32, %s33
      %p35 = scmp.eq.s32.totalorder %s34, 0
      %s37 = sadd.s32 %s36, 1
      %s38 = scalar_select %p35, %s36, %s37
      %p41 = pneg %p35
      %p42 = scmp.eq.s32.totalorder %s12, 3
      %p43 = por %p41, %p42
      %p44 = scmp.ne.s32.totalorder %s36, %s39
      %p45 = scmp.eq.s32.totalorder %s12, 0
      %p46 = por %p44, %p45
      %p47 = scmp.ne.s32.totalorder %s36, %s39
      %p48 = scmp.eq.s32.totalorder %s17, 3
      %p49 = por %p47, %p48
      %p50 = scmp.ne.s32.totalorder %s39, %s40
      %p51 = scmp.eq.s32.totalorder %s17, 0
      %p52 = por %p50, %p51
      %p53 = scmp.ne.s32.totalorder %s39, %s40
      %p54 = scmp.eq.s32.totalorder %s18, 3
      %p55 = por %p53, %p54
      %p57 = scmp.ne.s32.totalorder %s40, %s56
      %p58 = scmp.eq.s32.totalorder %s18, 0
      %p59 = por %p57, %p58
      %s61 = sadd.s32 %s60, 1
      %p64 = scmp.eq.s32.totalorder %s12, 3
      %p65 = scmp.ne.s32.totalorder %s60, %s62
      %p66 = scmp.eq.s32.totalorder %s12, 0
      %p67 = por %p65, %p66
      %p68 = scmp.ne.s32.totalorder %s60, %s62
      %p69 = scmp.eq.s32.totalorder %s17, 3
      %p70 = por %p68, %p69
      %p71 = scmp.ne.s32.totalorder %s62, %s63
      %p72 = scmp.eq.s32.totalorder %s17, 0
      %p73 = por %p71, %p72
      %p74 = scmp.ne.s32.totalorder %s62, %s63
      %p75 = scmp.eq.s32.totalorder %s18, 3
      %p76 = por %p74, %p75
      %p78 = scmp.ne.s32.totalorder %s63, %s77
      %p79 = scmp.eq.s32.totalorder %s18, 0
      %p80 = por %p78, %p79
      %s81 = ssub.s32 %s19, %s31
      %s82 = ssub.s32 %s20, %s27
      %s83 = sor.u32 %s81, %s82
      %p84 = scmp.eq.s32.totalorder %s83, 0
      %s86 = sadd.s32 %s85, 1
      %s87 = scalar_select %p84, %s85, %s86
      %p90 = pneg %p84
      %p91 = scmp.eq.s32.totalorder %s12, 3
      %p92 = por %p90, %p91
      %p93 = scmp.ne.s32.totalorder %s85, %s88
      %p94 = scmp.eq.s32.totalorder %s12, 0
      %p95 = por %p93, %p94
      %p96 = scmp.ne.s32.totalorder %s85, %s88
      %p97 = scmp.eq.s32.totalorder %s17, 3
      %p98 = por %p96, %p97
      %p99 = scmp.ne.s32.totalorder %s88, %s89
      %p100 = scmp.eq.s32.totalorder %s17, 0
      %p101 = por %p99, %p100
      %p102 = scmp.ne.s32.totalorder %s88, %s89
      %p103 = scmp.eq.s32.totalorder %s18, 3
      %p104 = por %p102, %p103
      %p106 = scmp.ne.s32.totalorder %s89, %s105
      %p107 = scmp.eq.s32.totalorder %s18, 0
      %p108 = por %p106, %p107
      %p109 = scmp.le.s32.totalorder 1, %s12
      %p110 = scmp.lt.s32.totalorder %s12, 5
      %p111 = pnand %p109, %p110
      %p112 = pneg %p111
      // Predicated region
      $region9: #{tpu_custom_call.1} parent=5 // pred_check
        _
      $region10: #{tpu_custom_call.1} parent=5 // pred_check_branch
        %114 = sbr.rel (%p111) target = $region12
      $region11: #{tpu_custom_call.1} parent=5 // pred_region
        %s115 = ssub.s32 %s12, 1
        // Predicated region
        $region13: #{tpu_custom_call.1} parent=11 // pred_check
          %p116 = pneg %p73
        $region14: #{tpu_custom_call.1} parent=11 // pred_check_branch
          %118 = sbr.rel (%p116) target = $region16
        $region15: #{tpu_custom_call.1} parent=11 // pred_region
          %120 = vsyncadd [#allocation5], 0
          %s121 = sshll.u32 %s1, 4
          %s122 = int_to_ptr.hbm [resolvable:$true] %s121
          %s123 = sshll.u32 [#allocation4], 4
          %s124 = int_to_ptr.vmem [resolvable:$true] %s123
          %129 = dma.hbm_to_vmem [thread:$0]  %s122, 256, %s124, [#allocation5], 128, 128, 8
        $region16: #{tpu_custom_call.1} parent=11 // pred_fallthru
          _
      $region12: #{tpu_custom_call.1} parent=5 // pred_fallthru
        _
      %p130 = scmp.lt.s32.totalorder %s12, 4
      // Predicated region
      $region17: #{tpu_custom_call.1} parent=5 // pred_check
        %p131 = pneg %p130
      $region18: #{tpu_custom_call.1} parent=5 // pred_check_branch
        %133 = sbr.rel (%p131) target = $region20
      $region19: #{tpu_custom_call.1} parent=5 // pred_region
        // Predicated region
        $region21: #{tpu_custom_call.1} parent=19 // pred_check
          %p134 = pneg %p46
        $region22: #{tpu_custom_call.1} parent=19 // pred_check_branch
          %136 = sbr.rel (%p134) target = $region24
        $region23: #{tpu_custom_call.1} parent=19 // pred_region
          %s137 = sand.u32 %s36, 1
          %s138 = scalar_lea.sflag [#allocation3], %s137
          %s139 = sand.u32 %s36, 1
          %s140 = smul.addr %s139, 16
          %s141 = scalar_lea.vmem [#allocation2], %s140
          %s142 = smul.u32 2, %s20
          %144 = vsyncadd %s138, 0
          %s145 = smul.addr %s19, 4
          %s146 = sadd.s32 %s142, %s145
          %s147 = smul.addr %s146, 8
          %s148 = scalar_lea.hbm %s0, %s147
          %s149 = sshll.u32 %s148, 4
          %s150 = int_to_ptr.hbm [resolvable:$true] %s149
          %s151 = sshll.u32 %s141, 4
          %s152 = int_to_ptr.vmem [resolvable:$true] %s151
          %157 = dma.hbm_to_vmem [thread:$0]  %s150, 256, %s152, %s138, 128, 128, 8
        $region24: #{tpu_custom_call.1} parent=19 // pred_fallthru
          _
      $region20: #{tpu_custom_call.1} parent=5 // pred_fallthru
        _
      %p158 = scmp.le.s32.totalorder 1, %s12
      %p159 = scmp.lt.s32.totalorder %s12, 5
      %p160 = pnand %p158, %p159
      %p161 = pneg %p160
      // Predicated region
      $region25: #{tpu_custom_call.1} parent=5 // pred_check
        _
      $region26: #{tpu_custom_call.1} parent=5 // pred_check_branch
        %163 = sbr.rel (%p160) target = $region28
      $region27: #{tpu_custom_call.1} parent=5 // pred_region
        %s164 = ssub.s32 %s12, 1
        %s165 = sand.u32 %s39, 1
        %s166 = scalar_lea.sflag [#allocation3], %s165
        %s167 = sand.u32 %s39, 1
        %s168 = smul.addr %s167, 16
        %s169 = scalar_lea.vmem [#allocation2], %s168
        // Predicated region
        $region29: #{tpu_custom_call.1} parent=27 // pred_check
          %p170 = pneg %p52
        $region30: #{tpu_custom_call.1} parent=27 // pred_check_branch
          %172 = sbr.rel (%p170) target = $region32
        $region31: #{tpu_custom_call.1} parent=27 // pred_region
          %174 = dma.done %s166, 256
        $region32: #{tpu_custom_call.1} parent=27 // pred_fallthru
          _
        // Predicated region
        $region33: #{tpu_custom_call.1} parent=27 // pred_check
          %p175 = pneg %p73
        $region34: #{tpu_custom_call.1} parent=27 // pred_check_branch
          %177 = sbr.rel (%p175) target = $region36
        $region35: #{tpu_custom_call.1} parent=27 // pred_region
          %179 = dma.done [#allocation5], 256
        $region36: #{tpu_custom_call.1} parent=27 // pred_fallthru
          _
        %s180 = sand.u32 %s39, 1
        %s181 = scalar_lea.sflag [#allocation3], %s180
        %s182 = sand.u32 %s39, 1
        %s183 = smul.addr %s182, 16
        %s184 = scalar_lea.vmem [#allocation2], %s183
        %p185 = pneg %p52
        %p186 = pneg %p49
        %p187 = pneg %p73
        %p188 = pneg %p70
        %p189 = pneg %p101
        %p190 = pneg %p98
        %s191 = sand.u32 %s88, 1
        %s192 = sand.u32 %s88, 1
        %s193 = smul.addr %s192, 64
        %s194 = scalar_lea.vmem [#allocation6], %s193
        %s195 = smul.u32 2, %s22
        %s196 = smul.u32 2, %s22
        %v197 = vld [vmem:[#allocation4] sm:$0xff]
        %v198 = vld [vmem:[#allocation4 + $0x8] sm:$0xff]
        %v199 = vld [vmem:[%s169] sm:$0xff]
        %v200 = vld [vmem:[%s169 + $0x8] sm:$0xff]
        %vm201 = vcmask 130048
        %v203 = vsel %vm201, %v199, 0
        %v206 = vsel %vm201, %v200, 0
        %208 = vmatpush.msra.mxu0 0.0
        %209 = vmatpush.msra.mxu0 0.0
        %210 = vmatpush.msra.mxu0 0.0
        %211 = vmatpush.msra.mxu0 0.0
        %212 = vmatpush.msra.mxu0 0.0
        %213 = vmatpush.msra.mxu0 0.0
        %214 = vmatpush.msra.mxu0 0.0
        %215 = vmatpush.msra.mxu0 0.0
        %216 = vmatpush.msra.mxu0 0.0
        %217 = vmatpush.msra.mxu0 0.0
        %218 = vmatpush.msra.mxu0 0.0
        %219 = vmatpush.msra.mxu0 0.0
        %220 = vmatpush.msra.mxu0 0.0
        %221 = vmatpush.msra.mxu0 0.0
        %v222 = vand.u32 %v198, 4294901760
        %223 = vmatpush.msra.mxu0 %v222
        %v224 = vand.u32 %v197, 4294901760
        %225 = vmatpush.msra.mxu0 %v224
        %v226 = vand.u32 %v203, 4294901760
        %v227 = vsub.f32 %v203, %v226
        %v228 = vand.u32 %v227, 4294901760
        %v229 = vsub.f32 %v227, %v228
        %v230 = vand.u32 %v229, 4294901760
        %231 = vmatmul.f32.gmra.mxu0 %v230
        %v232 = vpop.f32.mrf.mxu0
        %v233 = vadd.f32 0.0, %v232
        %v234 = vand.u32 %v206, 4294901760
        %v235 = vsub.f32 %v206, %v234
        %v236 = vand.u32 %v235, 4294901760
        %v237 = vsub.f32 %v235, %v236
        %v238 = vand.u32 %v237, 4294901760
        %239 = vmatmul.f32.gmra.mxu0 %v238
        %v240 = vpop.f32.mrf.mxu0
        %v241 = vadd.f32 0.0, %v240
        %242 = vdwg.mxu0
        %243 = vmatpush.msra.mxu0 0.0
        %244 = vmatpush.msra.mxu0 0.0
        %245 = vmatpush.msra.mxu0 0.0
        %246 = vmatpush.msra.mxu0 0.0
        %247 = vmatpush.msra.mxu0 0.0
        %248 = vmatpush.msra.mxu0 0.0
        %249 = vmatpush.msra.mxu0 0.0
        %250 = vmatpush.msra.mxu0 0.0
        %251 = vmatpush.msra.mxu0 0.0
        %252 = vmatpush.msra.mxu0 0.0
        %253 = vmatpush.msra.mxu0 0.0
        %254 = vmatpush.msra.mxu0 0.0
        %255 = vmatpush.msra.mxu0 0.0
        %256 = vmatpush.msra.mxu0 0.0
        %v257 = vand.u32 %v198, 4294901760
        %v258 = vsub.f32 %v198, %v257
        %v259 = vand.u32 %v258, 4294901760
        %v260 = vsub.f32 %v258, %v259
        %v261 = vand.u32 %v260, 4294901760
        %262 = vmatpush.msra.mxu0 %v261
        %v263 = vand.u32 %v197, 4294901760
        %v264 = vsub.f32 %v197, %v263
        %v265 = vand.u32 %v264, 4294901760
        %v266 = vsub.f32 %v264, %v265
        %v267 = vand.u32 %v266, 4294901760
        %268 = vmatpush.msra.mxu0 %v267
        %v269 = vand.u32 %v203, 4294901760
        %270 = vmatmul.f32.gmra.mxu0 %v269
        %v271 = vpop.f32.mrf.mxu0
        %v272 = vadd.f32 %v233, %v271
        %v273 = vand.u32 %v206, 4294901760
        %274 = vmatmul.f32.gmra.mxu0 %v273
        %v275 = vpop.f32.mrf.mxu0
        %v276 = vadd.f32 %v241, %v275
        %277 = vdwg.mxu0
        %278 = vmatpush.msra.mxu0 0.0
        %279 = vmatpush.msra.mxu0 0.0
        %280 = vmatpush.msra.mxu0 0.0
        %281 = vmatpush.msra.mxu0 0.0
        %282 = vmatpush.msra.mxu0 0.0
        %283 = vmatpush.msra.mxu0 0.0
        %284 = vmatpush.msra.mxu0 0.0
        %285 = vmatpush.msra.mxu0 0.0
        %286 = vmatpush.msra.mxu0 0.0
        %287 = vmatpush.msra.mxu0 0.0
        %288 = vmatpush.msra.mxu0 0.0
        %289 = vmatpush.msra.mxu0 0.0
        %290 = vmatpush.msra.mxu0 0.0
        %291 = vmatpush.msra.mxu0 0.0
        %v292 = vand.u32 %v198, 4294901760
        %v293 = vsub.f32 %v198, %v292
        %294 = vmatpush.msra.mxu0 %v293
        %v295 = vand.u32 %v197, 4294901760
        %v296 = vsub.f32 %v197, %v295
        %297 = vmatpush.msra.mxu0 %v296
        %v298 = vand.u32 %v203, 4294901760
        %v299 = vsub.f32 %v203, %v298
        %300 = vmatmul.f32.gmra.mxu0 %v299
        %v301 = vpop.f32.mrf.mxu0
        %v302 = vadd.f32 %v272, %v301
        %v303 = vand.u32 %v206, 4294901760
        %v304 = vsub.f32 %v206, %v303
        %305 = vmatmul.f32.gmra.mxu0 %v304
        %v306 = vpop.f32.mrf.mxu0
        %v307 = vadd.f32 %v276, %v306
        %308 = vdwg.mxu0
        %309 = vmatpush.msra.mxu0 0.0
        %310 = vmatpush.msra.mxu0 0.0
        %311 = vmatpush.msra.mxu0 0.0
        %312 = vmatpush.msra.mxu0 0.0
        %313 = vmatpush.msra.mxu0 0.0
        %314 = vmatpush.msra.mxu0 0.0
        %315 = vmatpush.msra.mxu0 0.0
        %316 = vmatpush.msra.mxu0 0.0
        %317 = vmatpush.msra.mxu0 0.0
        %318 = vmatpush.msra.mxu0 0.0
        %319 = vmatpush.msra.mxu0 0.0
        %320 = vmatpush.msra.mxu0 0.0
        %321 = vmatpush.msra.mxu0 0.0
        %322 = vmatpush.msra.mxu0 0.0
        %v323 = vand.u32 %v198, 4294901760
        %324 = vmatpush.msra.mxu0 %v323
        %v325 = vand.u32 %v197, 4294901760
        %326 = vmatpush.msra.mxu0 %v325
        %v327 = vand.u32 %v203, 4294901760
        %v328 = vsub.f32 %v203, %v327
        %v329 = vand.u32 %v328, 4294901760
        %330 = vmatmul.f32.gmra.mxu0 %v329
        %v331 = vpop.f32.mrf.mxu0
        %v332 = vadd.f32 %v302, %v331
        %v333 = vand.u32 %v206, 4294901760
        %v334 = vsub.f32 %v206, %v333
        %v335 = vand.u32 %v334, 4294901760
        %336 = vmatmul.f32.gmra.mxu0 %v335
        %v337 = vpop.f32.mrf.mxu0
        %v338 = vadd.f32 %v307, %v337
        %339 = vdwg.mxu0
        %340 = vmatpush.msra.mxu0 0.0
        %341 = vmatpush.msra.mxu0 0.0
        %342 = vmatpush.msra.mxu0 0.0
        %343 = vmatpush.msra.mxu0 0.0
        %344 = vmatpush.msra.mxu0 0.0
        %345 = vmatpush.msra.mxu0 0.0
        %346 = vmatpush.msra.mxu0 0.0
        %347 = vmatpush.msra.mxu0 0.0
        %348 = vmatpush.msra.mxu0 0.0
        %349 = vmatpush.msra.mxu0 0.0
        %350 = vmatpush.msra.mxu0 0.0
        %351 = vmatpush.msra.mxu0 0.0
        %352 = vmatpush.msra.mxu0 0.0
        %353 = vmatpush.msra.mxu0 0.0
        %v354 = vand.u32 %v198, 4294901760
        %v355 = vsub.f32 %v198, %v354
        %v356 = vand.u32 %v355, 4294901760
        %357 = vmatpush.msra.mxu0 %v356
        %v358 = vand.u32 %v197, 4294901760
        %v359 = vsub.f32 %v197, %v358
        %v360 = vand.u32 %v359, 4294901760
        %361 = vmatpush.msra.mxu0 %v360
        %v362 = vand.u32 %v203, 4294901760
        %363 = vmatmul.f32.gmra.mxu0 %v362
        %v364 = vpop.f32.mrf.mxu0
        %v365 = vadd.f32 %v332, %v364
        %v366 = vand.u32 %v206, 4294901760
        %367 = vmatmul.f32.gmra.mxu0 %v366
        %v368 = vpop.f32.mrf.mxu0
        %v369 = vadd.f32 %v338, %v368
        %370 = vdwg.mxu0
        %371 = vmatpush.msra.mxu0 0.0
        %372 = vmatpush.msra.mxu0 0.0
        %373 = vmatpush.msra.mxu0 0.0
        %374 = vmatpush.msra.mxu0 0.0
        %375 = vmatpush.msra.mxu0 0.0
        %376 = vmatpush.msra.mxu0 0.0
        %377 = vmatpush.msra.mxu0 0.0
        %378 = vmatpush.msra.mxu0 0.0
        %379 = vmatpush.msra.mxu0 0.0
        %380 = vmatpush.msra.mxu0 0.0
        %381 = vmatpush.msra.mxu0 0.0
        %382 = vmatpush.msra.mxu0 0.0
        %383 = vmatpush.msra.mxu0 0.0
        %384 = vmatpush.msra.mxu0 0.0
        %v385 = vand.u32 %v198, 4294901760
        %386 = vmatpush.msra.mxu0 %v385
        %v387 = vand.u32 %v197, 4294901760
        %388 = vmatpush.msra.mxu0 %v387
        %v389 = vand.u32 %v203, 4294901760
        %390 = vmatmul.f32.gmra.mxu0 %v389
        %v391 = vpop.f32.mrf.mxu0
        %v392 = vadd.f32 %v365, %v391
        %v393 = vand.u32 %v206, 4294901760
        %394 = vmatmul.f32.gmra.mxu0 %v393
        %v395 = vpop.f32.mrf.mxu0
        %v396 = vadd.f32 %v369, %v395
        %397 = vdwg.mxu0
        %vm398 = vcmask 64512
        %399 = vst.msk [vmem:[%s194] sm:$0xff] %vm398, %v392
        %400 = vst.msk [vmem:[%s194 + $0x8] sm:$0xff] %vm398, %v396
        %403 = vrot.lane.b32.xlu0 %v392, 120
        %v404 = vpop.permute.xlu0 %403
        %405 = vrot.lane.b32.xlu0 %v396, 120
        %v406 = vpop.permute.xlu0 %405
        %s409 = scalar_lea.vmem %s194, 16 [#allocation6]
        %410 = vst.msk [vmem:[%s409] sm:$0xff] %vm398, %v404
        %411 = vst.msk [vmem:[%s409 + $0x8] sm:$0xff] %vm398, %v406
        %v412 = vld [vmem:[%s169] sm:$0xff]
        %v413 = vld [vmem:[%s169 + $0x8] sm:$0xff]
        %416 = vrot.lane.b32.xlu0 %v412, 112
        %v417 = vpop.permute.xlu0 %416
        %418 = vrot.lane.b32.xlu0 %v413, 112
        %v419 = vpop.permute.xlu0 %418
        %v420 = vsel %vm201, %v417, 0
        %v422 = vsel %vm201, %v419, 0
        %424 = vmatpush.msra.mxu0 0.0
        %425 = vmatpush.msra.mxu0 0.0
        %426 = vmatpush.msra.mxu0 0.0
        %427 = vmatpush.msra.mxu0 0.0
        %428 = vmatpush.msra.mxu0 0.0
        %429 = vmatpush.msra.mxu0 0.0
        %430 = vmatpush.msra.mxu0 0.0
        %431 = vmatpush.msra.mxu0 0.0
        %432 = vmatpush.msra.mxu0 0.0
        %433 = vmatpush.msra.mxu0 0.0
        %434 = vmatpush.msra.mxu0 0.0
        %435 = vmatpush.msra.mxu0 0.0
        %436 = vmatpush.msra.mxu0 0.0
        %437 = vmatpush.msra.mxu0 0.0
        %v438 = vand.u32 %v198, 4294901760
        %439 = vmatpush.msra.mxu0 %v438
        %v440 = vand.u32 %v197, 4294901760
        %441 = vmatpush.msra.mxu0 %v440
        %v442 = vand.u32 %v420, 4294901760
        %v443 = vsub.f32 %v420, %v442
        %v444 = vand.u32 %v443, 4294901760
        %v445 = vsub.f32 %v443, %v444
        %v446 = vand.u32 %v445, 4294901760
        %447 = vmatmul.f32.gmra.mxu0 %v446
        %v448 = vpop.f32.mrf.mxu0
        %v449 = vadd.f32 0.0, %v448
        %v450 = vand.u32 %v422, 4294901760
        %v451 = vsub.f32 %v422, %v450
        %v452 = vand.u32 %v451, 4294901760
        %v453 = vsub.f32 %v451, %v452
        %v454 = vand.u32 %v453, 4294901760
        %455 = vmatmul.f32.gmra.mxu0 %v454
        %v456 = vpop.f32.mrf.mxu0
        %v457 = vadd.f32 0.0, %v456
        %458 = vdwg.mxu0
        %459 = vmatpush.msra.mxu0 0.0
        %460 = vmatpush.msra.mxu0 0.0
        %461 = vmatpush.msra.mxu0 0.0
        %462 = vmatpush.msra.mxu0 0.0
        %463 = vmatpush.msra.mxu0 0.0
        %464 = vmatpush.msra.mxu0 0.0
        %465 = vmatpush.msra.mxu0 0.0
        %466 = vmatpush.msra.mxu0 0.0
        %467 = vmatpush.msra.mxu0 0.0
        %468 = vmatpush.msra.mxu0 0.0
        %469 = vmatpush.msra.mxu0 0.0
        %470 = vmatpush.msra.mxu0 0.0
        %471 = vmatpush.msra.mxu0 0.0
        %472 = vmatpush.msra.mxu0 0.0
        %v473 = vand.u32 %v198, 4294901760
        %v474 = vsub.f32 %v198, %v473
        %v475 = vand.u32 %v474, 4294901760
        %v476 = vsub.f32 %v474, %v475
        %v477 = vand.u32 %v476, 4294901760
        %478 = vmatpush.msra.mxu0 %v477
        %v479 = vand.u32 %v197, 4294901760
        %v480 = vsub.f32 %v197, %v479
        %v481 = vand.u32 %v480, 4294901760
        %v482 = vsub.f32 %v480, %v481
        %v483 = vand.u32 %v482, 4294901760
        %484 = vmatpush.msra.mxu0 %v483
        %v485 = vand.u32 %v420, 4294901760
        %486 = vmatmul.f32.gmra.mxu0 %v485
        %v487 = vpop.f32.mrf.mxu0
        %v488 = vadd.f32 %v449, %v487
        %v489 = vand.u32 %v422, 4294901760
        %490 = vmatmul.f32.gmra.mxu0 %v489
        %v491 = vpop.f32.mrf.mxu0
        %v492 = vadd.f32 %v457, %v491
        %493 = vdwg.mxu0
        %494 = vmatpush.msra.mxu0 0.0
        %495 = vmatpush.msra.mxu0 0.0
        %496 = vmatpush.msra.mxu0 0.0
        %497 = vmatpush.msra.mxu0 0.0
        %498 = vmatpush.msra.mxu0 0.0
        %499 = vmatpush.msra.mxu0 0.0
        %500 = vmatpush.msra.mxu0 0.0
        %501 = vmatpush.msra.mxu0 0.0
        %502 = vmatpush.msra.mxu0 0.0
        %503 = vmatpush.msra.mxu0 0.0
        %504 = vmatpush.msra.mxu0 0.0
        %505 = vmatpush.msra.mxu0 0.0
        %506 = vmatpush.msra.mxu0 0.0
        %507 = vmatpush.msra.mxu0 0.0
        %v508 = vand.u32 %v198, 4294901760
        %v509 = vsub.f32 %v198, %v508
        %510 = vmatpush.msra.mxu0 %v509
        %v511 = vand.u32 %v197, 4294901760
        %v512 = vsub.f32 %v197, %v511
        %513 = vmatpush.msra.mxu0 %v512
        %v514 = vand.u32 %v420, 4294901760
        %v515 = vsub.f32 %v420, %v514
        %516 = vmatmul.f32.gmra.mxu0 %v515
        %v517 = vpop.f32.mrf.mxu0
        %v518 = vadd.f32 %v488, %v517
        %v519 = vand.u32 %v422, 4294901760
        %v520 = vsub.f32 %v422, %v519
        %521 = vmatmul.f32.gmra.mxu0 %v520
        %v522 = vpop.f32.mrf.mxu0
        %v523 = vadd.f32 %v492, %v522
        %524 = vdwg.mxu0
        %525 = vmatpush.msra.mxu0 0.0
        %526 = vmatpush.msra.mxu0 0.0
        %527 = vmatpush.msra.mxu0 0.0
        %528 = vmatpush.msra.mxu0 0.0
        %529 = vmatpush.msra.mxu0 0.0
        %530 = vmatpush.msra.mxu0 0.0
        %531 = vmatpush.msra.mxu0 0.0
        %532 = vmatpush.msra.mxu0 0.0
        %533 = vmatpush.msra.mxu0 0.0
        %534 = vmatpush.msra.mxu0 0.0
        %535 = vmatpush.msra.mxu0 0.0
        %536 = vmatpush.msra.mxu0 0.0
        %537 = vmatpush.msra.mxu0 0.0
        %538 = vmatpush.msra.mxu0 0.0
        %v539 = vand.u32 %v198, 4294901760
        %540 = vmatpush.msra.mxu0 %v539
        %v541 = vand.u32 %v197, 4294901760
        %542 = vmatpush.msra.mxu0 %v541
        %v543 = vand.u32 %v420, 4294901760
        %v544 = vsub.f32 %v420, %v543
        %v545 = vand.u32 %v544, 4294901760
        %546 = vmatmul.f32.gmra.mxu0 %v545
        %v547 = vpop.f32.mrf.mxu0
        %v548 = vadd.f32 %v518, %v547
        %v549 = vand.u32 %v422, 4294901760
        %v550 = vsub.f32 %v422, %v549
        %v551 = vand.u32 %v550, 4294901760
        %552 = vmatmul.f32.gmra.mxu0 %v551
        %v553 = vpop.f32.mrf.mxu0
        %v554 = vadd.f32 %v523, %v553
        %555 = vdwg.mxu0
        %556 = vmatpush.msra.mxu0 0.0
        %557 = vmatpush.msra.mxu0 0.0
        %558 = vmatpush.msra.mxu0 0.0
        %559 = vmatpush.msra.mxu0 0.0
        %560 = vmatpush.msra.mxu0 0.0
        %561 = vmatpush.msra.mxu0 0.0
        %562 = vmatpush.msra.mxu0 0.0
        %563 = vmatpush.msra.mxu0 0.0
        %564 = vmatpush.msra.mxu0 0.0
        %565 = vmatpush.msra.mxu0 0.0
        %566 = vmatpush.msra.mxu0 0.0
        %567 = vmatpush.msra.mxu0 0.0
        %568 = vmatpush.msra.mxu0 0.0
        %569 = vmatpush.msra.mxu0 0.0
        %v570 = vand.u32 %v198, 4294901760
        %v571 = vsub.f32 %v198, %v570
        %v572 = vand.u32 %v571, 4294901760
        %573 = vmatpush.msra.mxu0 %v572
        %v574 = vand.u32 %v197, 4294901760
        %v575 = vsub.f32 %v197, %v574
        %v576 = vand.u32 %v575, 4294901760
        %577 = vmatpush.msra.mxu0 %v576
        %v578 = vand.u32 %v420, 4294901760
        %579 = vmatmul.f32.gmra.mxu0 %v578
        %v580 = vpop.f32.mrf.mxu0
        %v581 = vadd.f32 %v548, %v580
        %v582 = vand.u32 %v422, 4294901760
        %583 = vmatmul.f32.gmra.mxu0 %v582
        %v584 = vpop.f32.mrf.mxu0
        %v585 = vadd.f32 %v554, %v584
        %586 = vdwg.mxu0
        %587 = vmatpush.msra.mxu0 0.0
        %588 = vmatpush.msra.mxu0 0.0
        %589 = vmatpush.msra.mxu0 0.0
        %590 = vmatpush.msra.mxu0 0.0
        %591 = vmatpush.msra.mxu0 0.0
        %592 = vmatpush.msra.mxu0 0.0
        %593 = vmatpush.msra.mxu0 0.0
        %594 = vmatpush.msra.mxu0 0.0
        %595 = vmatpush.msra.mxu0 0.0
        %596 = vmatpush.msra.mxu0 0.0
        %597 = vmatpush.msra.mxu0 0.0
        %598 = vmatpush.msra.mxu0 0.0
        %599 = vmatpush.msra.mxu0 0.0
        %600 = vmatpush.msra.mxu0 0.0
        %v601 = vand.u32 %v198, 4294901760
        %602 = vmatpush.msra.mxu0 %v601
        %v603 = vand.u32 %v197, 4294901760
        %604 = vmatpush.msra.mxu0 %v603
        %v605 = vand.u32 %v420, 4294901760
        %606 = vmatmul.f32.gmra.mxu0 %v605
        %v607 = vpop.f32.mrf.mxu0
        %v608 = vadd.f32 %v581, %v607
        %v609 = vand.u32 %v422, 4294901760
        %610 = vmatmul.f32.gmra.mxu0 %v609
        %v611 = vpop.f32.mrf.mxu0
        %v612 = vadd.f32 %v585, %v611
        %613 = vdwg.mxu0
        %s614 = scalar_lea.vmem %s194, 32 [#allocation6]
        %615 = vst.msk [vmem:[%s614] sm:$0xff] %vm398, %v608
        %616 = vst.msk [vmem:[%s614 + $0x8] sm:$0xff] %vm398, %v612
        %619 = vrot.lane.b32.xlu0 %v608, 120
        %v620 = vpop.permute.xlu0 %619
        %621 = vrot.lane.b32.xlu0 %v612, 120
        %v622 = vpop.permute.xlu0 %621
        %s625 = scalar_lea.vmem %s194, 48 [#allocation6]
        %626 = vst.msk [vmem:[%s625] sm:$0xff] %vm398, %v620
        %627 = vst.msk [vmem:[%s625 + $0x8] sm:$0xff] %vm398, %v622
        %s628 = sand.u32 %s88, 1
        %s629 = sand.u32 %s88, 1
        %s630 = smul.addr %s629, 64
        %s631 = scalar_lea.vmem [#allocation6], %s630
        // Predicated region
        $region37: #{tpu_custom_call.1} parent=27 // pred_check
          %p632 = pneg %p98
        $region38: #{tpu_custom_call.1} parent=27 // pred_check_branch
          %634 = sbr.rel (%p632) target = $region40
        $region39: #{tpu_custom_call.1} parent=27 // pred_region
          %s635 = smul.u32 2, %s22
          %s636 = smul.addr %s21, 16
          %s637 = sadd.s32 %s635, %s636
          %s638 = smul.addr %s637, 8
          %s639 = scalar_lea.vmem %s2, %s638
          // Predicated region
          $region41: #{tpu_custom_call.1} parent=39 // pred_check
            _
          $region42: #{tpu_custom_call.1} parent=39 // pred_check_branch
            %641 = sbr.rel (0) target = $region44
          $region43: #{tpu_custom_call.1} parent=39 // pred_region
            // Predicated region
            $region45: #{tpu_custom_call.1} parent=43 // pred_check
              _
            $region46: #{tpu_custom_call.1} parent=43 // pred_check_branch
              %643 = sbr.rel (0) target = $region48
            $region47: #{tpu_custom_call.1} parent=43 // pred_region
              // Predicated region
              $region60: #{tpu_custom_call.1} parent=47 // pred_check
                _
              $region61: #{tpu_custom_call.1} parent=47 // pred_check_branch
                %673 = sbr.rel (0) target = $region63
              $region62: #{tpu_custom_call.1} parent=47 // pred_region
                loop: start=0, step=1, limit=1
                $region64: #{tpu_custom_call.1} parent=62 // loop_pre_header
                  _
                $region65: #{tpu_custom_call.1} parent=62 // loop_header
                  %s675 = sphi 0, %s679
                  %p676 = scmp.ge.s32.totalorder %s675, 1
                  %s680 = sphi %s631, %s631
                  %s681 = sphi %s639, %s639
                $region66: #{tpu_custom_call.1} parent=62 // loop_header_branch
                  %678 = sbr.rel (%p676) target = $region70
                $region67: #{tpu_custom_call.1} parent=62 // loop_body
                  %v682 = vld [vmem:[%s680] sm:$0xff]
                  %683 = vst [vmem:[%s681] sm:$0xff] %v682
                  %v684 = vld [vmem:[%s680 + $0x8] sm:$0xff]
                  %685 = vst [vmem:[%s681 + $0x8] sm:$0xff] %v684
                  %v686 = vld [vmem:[%s680 + $0x10] sm:$0xff]
                  %687 = vst [vmem:[%s681 + $0x20] sm:$0xff] %v686
                  %v688 = vld [vmem:[%s680 + $0x18] sm:$0xff]
                  %689 = vst [vmem:[%s681 + $0x28] sm:$0xff] %v688
                  %v690 = vld [vmem:[%s680 + $0x20] sm:$0xff]
                  %691 = vst [vmem:[%s681 + $0x40] sm:$0xff] %v690
                  %v692 = vld [vmem:[%s680 + $0x28] sm:$0xff]
                  %693 = vst [vmem:[%s681 + $0x48] sm:$0xff] %v692
                  %v694 = vld [vmem:[%s680 + $0x30] sm:$0xff]
                  %695 = vst [vmem:[%s681 + $0x60] sm:$0xff] %v694
                  %v696 = vld [vmem:[%s680 + $0x38] sm:$0xff]
                  %697 = vst [vmem:[%s681 + $0x68] sm:$0xff] %v696
                $region68: #{tpu_custom_call.1} parent=62 // loop_footer
                  %s679 = sadd.s32 1, %s675
                $region69: #{tpu_custom_call.1} parent=62 // loop_footer_branch
                  %674 = sbr.rel target = $region65
                $region70: #{tpu_custom_call.1} parent=62 // loop_exit
                  _
              $region63: #{tpu_custom_call.1} parent=47 // pred_fallthru
                _
              // Predicated region
              $region71: #{tpu_custom_call.1} parent=47 // pred_check
                _
              $region72: #{tpu_custom_call.1} parent=47 // pred_check_branch
                %699 = sbr.rel target = $region74
              $region73: #{tpu_custom_call.1} parent=47 // pred_region
                _
              $region74: #{tpu_custom_call.1} parent=47 // pred_fallthru
                _
            $region48: #{tpu_custom_call.1} parent=43 // pred_fallthru
              _
            // Predicated region
            $region49: #{tpu_custom_call.1} parent=43 // pred_check
              _
            $region50: #{tpu_custom_call.1} parent=43 // pred_check_branch
              %645 = sbr.rel target = $region52
            $region51: #{tpu_custom_call.1} parent=43 // pred_region
              %s647 = ssub.s32 256, 1
              loop: start=0, step=1, limit=1
              $region53: #{tpu_custom_call.1} parent=51 // loop_pre_header
                _
              $region54: #{tpu_custom_call.1} parent=51 // loop_header
                %s649 = sphi 0, %s653
                %p650 = scmp.ge.s32.totalorder %s649, 1
                %s654 = sphi %s631, %s631
                %s655 = sphi %s639, %s639
              $region55: #{tpu_custom_call.1} parent=51 // loop_header_branch
                %652 = sbr.rel (%p650) target = $region59
              $region56: #{tpu_custom_call.1} parent=51 // loop_body
                %v656 = vld [vmem:[%s654] sm:%s647]
                %657 = vst [vmem:[%s655] sm:%s647] %v656
                %v658 = vld [vmem:[%s654 + $0x8] sm:%s647]
                %659 = vst [vmem:[%s655 + $0x8] sm:%s647] %v658
                %v660 = vld [vmem:[%s654 + $0x10] sm:%s647]
                %661 = vst [vmem:[%s655 + $0x20] sm:%s647] %v660
                %v662 = vld [vmem:[%s654 + $0x18] sm:%s647]
                %663 = vst [vmem:[%s655 + $0x28] sm:%s647] %v662
                %v664 = vld [vmem:[%s654 + $0x20] sm:%s647]
                %665 = vst [vmem:[%s655 + $0x40] sm:%s647] %v664
                %v666 = vld [vmem:[%s654 + $0x28] sm:%s647]
                %667 = vst [vmem:[%s655 + $0x48] sm:%s647] %v666
                %v668 = vld [vmem:[%s654 + $0x30] sm:%s647]
                %669 = vst [vmem:[%s655 + $0x60] sm:%s647] %v668
                %v670 = vld [vmem:[%s654 + $0x38] sm:%s647]
                %671 = vst [vmem:[%s655 + $0x68] sm:%s647] %v670
              $region57: #{tpu_custom_call.1} parent=51 // loop_footer
                %s653 = sadd.s32 1, %s649
              $region58: #{tpu_custom_call.1} parent=51 // loop_footer_branch
                %648 = sbr.rel target = $region54
              $region59: #{tpu_custom_call.1} parent=51 // loop_exit
                _
            $region52: #{tpu_custom_call.1} parent=43 // pred_fallthru
              _
          $region44: #{tpu_custom_call.1} parent=39 // pred_fallthru
            _
          %700 = vnop
        $region40: #{tpu_custom_call.1} parent=27 // pred_fallthru
          _
      $region28: #{tpu_custom_call.1} parent=5 // pred_fallthru
        _
      %p701 = scmp.le.s32.totalorder 2, %s12
      // Predicated region
      $region75: #{tpu_custom_call.1} parent=5 // pred_check
        %p702 = pneg %p701
      $region76: #{tpu_custom_call.1} parent=5 // pred_check_branch
        %704 = sbr.rel (%p702) target = $region78
      $region77: #{tpu_custom_call.1} parent=5 // pred_region
        %s705 = ssub.s32 %s12, 2
        // Predicated region
        $region79: #{tpu_custom_call.1} parent=77 // pred_check
          %p706 = pneg %p104
        $region80: #{tpu_custom_call.1} parent=77 // pred_check_branch
          %708 = sbr.rel (%p706) target = $region82
        $region81: #{tpu_custom_call.1} parent=77 // pred_region
          %s709 = sand.u32 %s89, 1
          %s710 = sand.u32 %s89, 1
          %s711 = smul.addr %s710, 64
          %s712 = scalar_lea.vmem [#allocation6], %s711
        $region82: #{tpu_custom_call.1} parent=77 // pred_fallthru
          _
      $region78: #{tpu_custom_call.1} parent=5 // pred_fallthru
        _
    $region6: #{tpu_custom_call.1} parent=1 // loop_footer
      %s16 = sadd.s32 1, %s12
    $region7: #{tpu_custom_call.1} parent=1 // loop_footer_branch
      %11 = sbr.rel target = $region3
    $region8: #{tpu_custom_call.1} parent=1 // loop_exit
      _
    %713 = vsyncpa [#allocation3], 1
    %s714 = scalar_lea.sflag [#allocation3], 1
    %715 = vsyncpa %s714, 1
    %716 = vsyncpa [#allocation5], 1

</llo_original>
